<compile_context>
chip_gen: v6e
topology: v6e:2x2x1
jax: 0.10.0
libtpu: 0.0.40
codegen_flags: <defaults>
</compile_context>

<pallas_src>
import functools

import numpy as np
import jax
import jax.numpy as jnp
from jax.experimental import pallas as pl
from jax.experimental.pallas import tpu as pltpu


POOL_SIZES = (1, 2, 3, 6)


# ----------------------------------------------------------------------------
# Constant-matrix builders (glue, plain numpy, cached)
# ----------------------------------------------------------------------------
def adaptive_pool_matrix(in_size: int, out_size: int) -> np.ndarray:
    """Row-stochastic matrix implementing 1-D AdaptiveAvgPool (PyTorch bins)."""
    A = np.zeros((out_size, in_size), dtype=np.float32)
    for i in range(out_size):
        start = (i * in_size) // out_size
        end = -(-((i + 1) * in_size) // out_size)  # ceil
        A[i, start:end] = 1.0 / (end - start)
    return A


def bilinear_matrix_align_corners(out_size: int, in_size: int) -> np.ndarray:
    """1-D bilinear interpolation matrix, align_corners=True (PyTorch)."""
    U = np.zeros((out_size, in_size), dtype=np.float32)
    if in_size == 1:
        U[:, 0] = 1.0
        return U
    scale = (in_size - 1) / (out_size - 1)
    for i in range(out_size):
        src = i * scale
        i0 = min(int(np.floor(src)), in_size - 1)
        i1 = min(i0 + 1, in_size - 1)
        frac = src - i0
        U[i, i0] += 1.0 - frac
        U[i, i1] += frac
    return U


@functools.lru_cache(maxsize=None)
def _psp_constants(H: int, W: int, pool_sizes: tuple):
    """Stacked pooling / bilinear-upsample matrices (cached per (H, W)).

    Returns:
      A_T : (HW, P2T)  all four adaptive-pool operators, transposed.
      U_T : (P2T, HW)  all four bilinear-upsample operators, transposed.
    where P2T = sum(P*P for P in pool_sizes).
    """
    a_blocks, ut_blocks = [], []
    for P in pool_sizes:
        Ah = adaptive_pool_matrix(H, P)
        Aw = adaptive_pool_matrix(W, P)
        a_blocks.append(np.kron(Ah, Aw))                      # (P*P, HW)
        Uh = bilinear_matrix_align_corners(H, P)
        Uw = bilinear_matrix_align_corners(W, P)
        ut_blocks.append(np.kron(Uh, Uw).T)                   # (P*P, HW)
    A_all = np.concatenate(a_blocks, axis=0)                  # (P2T, HW)
    U_allT = np.concatenate(ut_blocks, axis=0)                # (P2T, HW)
    return jnp.asarray(A_all.T), jnp.asarray(U_allT)


def _branch_mask(O: int, pool_sizes: tuple) -> np.ndarray:
    """Block-diagonal (4*O, P2T) 0/1 mask: row block b keeps only branch b's cols."""
    p2t = sum(P * P for P in pool_sizes)
    mask = np.zeros((len(pool_sizes) * O, p2t), dtype=np.float32)
    col = 0
    for b, P in enumerate(pool_sizes):
        mask[b * O:(b + 1) * O, col:col + P * P] = 1.0
        col += P * P
    return mask


# ----------------------------------------------------------------------------
# Fused Pallas kernel: pooling + all 4 branches + identity, NB batch elems/step
# ----------------------------------------------------------------------------
def _make_psp_kernel(NB: int, C: int, O: int, HW: int):
    CO = len(POOL_SIZES) * O  # = 4*O

    def kernel(at_ref, ut_ref, w_ref, shift_ref, mask_ref, x_ref, o_ref, sem):
        # at_ref:    (HW, P2T)          stacked pooling matrices (transposed)
        # ut_ref:    (P2T, HW)          stacked bilinear matrices (transposed)
        # w_ref:     (4O, C)            1x1 conv weights, BN scale folded in
        # shift_ref: (4O, 1)            folded BN shift
        # mask_ref:  (4O, P2T)          block-diagonal branch mask
        # x_ref:     (NB, C, HW)        batch block (NCHW-native)
        # o_ref:     (NB, C + 4O, HW)   concatenated output block

        # Identity passthrough via the DMA engine: overlaps with the matmuls
        # below and does not consume vld/vst VLIW slots.
        idcopy = pltpu.make_async_copy(x_ref, o_ref.at[:, pl.ds(0, C), :], sem.at[0])
        idcopy.start()

        # (1) All four adaptive average pools for all NB batch elements as a
        #     single lane-dense matmul with M = NB*C rows.
        x2d = x_ref[...].reshape(NB * C, HW)
        pooled = jnp.dot(x2d, at_ref[...],
                         preferred_element_type=jnp.float32)          # (NB*C, P2T)

        w_all = w_ref[...]                                             # (4O, C)
        shift = shift_ref[...]                                         # (4O, 1)
        mask = mask_ref[...]                                           # (4O, P2T)
        ut = ut_ref[...]                                               # (P2T, HW)

        # (2)+(3) Per batch element: one fused conv matmul, shift+ReLU, mask,
        #          one fused upsample matmul, one lane-dense (4O, HW) store.
        for n in range(NB):
            pb = pooled[n * C:(n + 1) * C, :]                          # (C, P2T)
            y = jnp.dot(w_all, pb, preferred_element_type=jnp.float32)  # (4O, P2T)
            # Mask AFTER shift+ReLU (cross-branch columns are garbage) and
            # BEFORE the upsample matmul.
            y = jnp.maximum(y + shift, 0.0) * mask
            feat = jnp.dot(y, ut, preferred_element_type=jnp.float32)   # (4O, HW)
            o_ref[n, C:, :] = feat.astype(o_ref.dtype)

        idcopy.wait()

    return kernel


def _pick_batch_block(N: int, per_elem_bytes: int, budget_bytes: int = 8 << 20) -> int:
    """Largest divisor of N whose double-buffered x+out blocks fit the budget."""
    nb = max(1, min(N, budget_bytes // max(per_elem_bytes, 1)))
    while N % nb:
        nb -= 1
    return nb


def pyramid_pooling(x_nchw, branch_params):
    """branch_params: list of 4 tuples (W (C,O), bn_scale (1,O), bn_shift (1,O))."""
    N, C, H, W_sp = x_nchw.shape
    O = branch_params[0][0].shape[1]
    HW = H * W_sp
    nb_branches = len(POOL_SIZES)
    CO = nb_branches * O
    p2t = sum(P * P for P in POOL_SIZES)
    itemsize = np.dtype(np.float32).itemsize

    at, ut = _psp_constants(H, W_sp, POOL_SIZES)
    mask = jnp.asarray(_branch_mask(O, POOL_SIZES))                          # (4O, P2T)

    # Fold BN scale into the conv weights; stack all branches into one matrix.
    w_all = jnp.concatenate([(w * scale).T for (w, scale, _) in branch_params],
                            axis=0)                                          # (4O, C)
    shift_all = jnp.concatenate([shift.reshape(O, 1) for (_, _, shift) in branch_params],
                                axis=0)                                      # (4O, 1)

    x_flat = x_nchw.reshape(N, C, HW)   # free reshape, NCHW-native layout

    # Batch blocking: process NB elements per grid step.
    # TODO(synk): for production shapes (large C*HW) add an HW-tile grid axis /
    #             two-call split so blocks fit v7x's 64 MiB VMEM.
    per_elem_bytes = (C * HW + (C + CO) * HW) * itemsize * 2   # double-buffered
    NB = _pick_batch_block(N, per_elem_bytes)
    grid = (N // NB,)

    # VMEM budget (double-buffered blocks + constants), with headroom.
    block_bytes = itemsize * (
        HW * p2t + p2t * HW + CO * C + CO + CO * p2t           # constants
        + NB * C * HW + NB * (C + CO) * HW                     # x + out blocks
    )
    vmem_limit = int(min(96 << 20, max(32 << 20, 2 * block_bytes + (4 << 20))))

    flops = int(2 * N * (C * HW * p2t + CO * C * p2t + CO * p2t * HW))
    bytes_accessed = int(itemsize * (
        N * C * HW + N * (C + CO) * HW + 2 * HW * p2t + CO * C + CO + CO * p2t))

    out_flat = pl.pallas_call(
        _make_psp_kernel(NB, C, O, HW),
        out_shape=jax.ShapeDtypeStruct((N, C + CO, HW), x_nchw.dtype),
        grid=grid,
        in_specs=[
            pl.BlockSpec((HW, p2t), lambda n: (0, 0)),
            pl.BlockSpec((p2t, HW), lambda n: (0, 0)),
            pl.BlockSpec((CO, C), lambda n: (0, 0)),
            pl.BlockSpec((CO, 1), lambda n: (0, 0)),
            pl.BlockSpec((CO, p2t), lambda n: (0, 0)),
            pl.BlockSpec((NB, C, HW), lambda n: (n, 0, 0)),
        ],
        out_specs=pl.BlockSpec((NB, C + CO, HW), lambda n: (n, 0, 0)),
        scratch_shapes=[pltpu.SemaphoreType.DMA((1,))],
        compiler_params=pltpu.CompilerParams(
            dimension_semantics=("parallel",),
            vmem_limit_bytes=vmem_limit,
        ),
        cost_estimate=pl.CostEstimate(
            flops=flops, transcendentals=0, bytes_accessed=bytes_accessed),
    )(at, ut, w_all, shift_all, mask, x_flat)

    return out_flat.reshape(N, C + CO, H, W_sp)       # (N, 2C, H, W)


# ----------------------------------------------------------------------------
# Pure-JAX reference (for correctness check)
# ----------------------------------------------------------------------------
def pyramid_pooling_ref(x_nchw, branch_params):
    N, C, H, W_sp = x_nchw.shape
    outs = [x_nchw]
    for P, (w, scale, shift) in zip(POOL_SIZES, branch_params):
        Ah = jnp.asarray(adaptive_pool_matrix(H, P))
        Aw = jnp.asarray(adaptive_pool_matrix(W_sp, P))
        pooled = jnp.einsum('ph,qw,nchw->ncpq', Ah, Aw, x_nchw)
        y = jnp.einsum('co,ncpq->nopq', w, pooled)
        y = jnp.maximum(y * scale.reshape(1, -1, 1, 1) + shift.reshape(1, -1, 1, 1), 0.0)
        Uh = jnp.asarray(bilinear_matrix_align_corners(H, P))
        Uw = jnp.asarray(bilinear_matrix_align_corners(W_sp, P))
        f = jnp.einsum('hp,wq,nopq->nohw', Uh, Uw, y)
        outs.append(f)
    return jnp.concatenate(outs, axis=1)


# ----------------------------------------------------------------------------
# Main
# ----------------------------------------------------------------------------
if __name__ == "__main__":
    N, C, H, W_sp = 2, 16, 16, 16          # in_channels=16 -> out_channels=4 per branch
    O = C // 4
    eps = 1e-5

    key = jax.random.PRNGKey(0)
    key, kx = jax.random.split(key)
    x = jax.random.normal(kx, (N, C, H, W_sp), dtype=jnp.float32)

    branch_params = []
    for _ in POOL_SIZES:
        key, kw, kg, kb, km, kv = jax.random.split(key, 6)
        w = (jax.random.normal(kw, (C, O), dtype=jnp.float32) * 0.1)        # 1x1 conv weight^T
        gamma = jax.random.uniform(kg, (O,), minval=0.5, maxval=1.5, dtype=jnp.float32)
        beta = jax.random.normal(kb, (O,), dtype=jnp.float32) * 0.1
        run_mean = jax.random.normal(km, (O,), dtype=jnp.float32) * 0.1
        run_var = jax.random.uniform(kv, (O,), minval=0.5, maxval=1.5, dtype=jnp.float32)
        bn_scale = gamma / jnp.sqrt(run_var + eps)
        bn_shift = beta - run_mean * bn_scale
        branch_params.append((w, bn_scale.reshape(1, O), bn_shift.reshape(1, O)))

    out = pyramid_pooling(x, branch_params)
    out = jax.block_until_ready(out)

    ref = jax.block_until_ready(pyramid_pooling_ref(x, branch_params))
    assert out.shape == (N, 2 * C, H, W_sp), out.shape
    np.testing.assert_allclose(np.asarray(out), np.asarray(ref), rtol=1e-4, atol=1e-4)

    print("KERNEL_OK")
</pallas_src>

<mosaic_0001>
module attributes {stable_mosaic.version = 11 : i64} {
  func.func @kernel(%arg0: i32, %arg1: memref<256x50xf32, #tpu.memory_space<vmem>>, %arg2: memref<50x256xf32, #tpu.memory_space<vmem>>, %arg3: memref<16x16xf32, #tpu.memory_space<vmem>>, %arg4: memref<16x1xf32, #tpu.memory_space<vmem>>, %arg5: memref<16x50xf32, #tpu.memory_space<vmem>>, %arg6: memref<2x16x256xf32, #tpu.memory_space<vmem>>, %arg7: memref<2x32x256xf32, #tpu.memory_space<vmem>>, %arg8: memref<1x!tpu.dma_semaphore, #tpu.memory_space<semaphore_mem>>) attributes {dimension_semantics = [#tpu.dimension_semantics<parallel>], iteration_bounds = array<i64: 1>, scalar_prefetch = 0 : i64, scratch_operands = 1 : i64, tpu.core_type = #tpu.core_type<tc>, window_params = [{pipeline_mode = #tpu.pipeline_mode<synchronous>, transform_indices = @transform_0, window_bounds = array<i64: 256, 50>}, {pipeline_mode = #tpu.pipeline_mode<synchronous>, transform_indices = @transform_1, window_bounds = array<i64: 50, 256>}, {pipeline_mode = #tpu.pipeline_mode<synchronous>, transform_indices = @transform_2, window_bounds = array<i64: 16, 16>}, {pipeline_mode = #tpu.pipeline_mode<synchronous>, transform_indices = @transform_3, window_bounds = array<i64: 16, 1>}, {pipeline_mode = #tpu.pipeline_mode<synchronous>, transform_indices = @transform_4, window_bounds = array<i64: 16, 50>}, {transform_indices = @transform_5, window_bounds = array<i64: 2, 16, 256>}, {transform_indices = @transform_6, window_bounds = array<i64: 2, 32, 256>}]} {
    %c0_i32 = arith.constant 0 : i32
    %c0_i32_0 = arith.constant 0 : i32
    %c0_i32_1 = arith.constant 0 : i32
    %c0_i32_2 = arith.constant 0 : i32
    %0 = tpu.memref_slice %arg7[%c0_i32_0, %c0_i32_1, %c0_i32_2] : memref<2x32x256xf32, #tpu.memory_space<vmem>> -> memref<2x16x256xf32, #tpu.memory_space<vmem>>
    %1 = tpu.memref_slice %arg8[%c0_i32] : memref<1x!tpu.dma_semaphore, #tpu.memory_space<semaphore_mem>> -> memref<1x!tpu.dma_semaphore, #tpu.memory_space<semaphore_mem>>
    %2 = tpu.memref_squeeze %1 : memref<1x!tpu.dma_semaphore, #tpu.memory_space<semaphore_mem>> -> memref<!tpu.dma_semaphore, #tpu.memory_space<semaphore_mem>>
    tpu.enqueue_dma source(%arg6 : memref<2x16x256xf32, #tpu.memory_space<vmem>>) target(%0 : memref<2x16x256xf32, #tpu.memory_space<vmem>>) target_semaphore(%2 : memref<!tpu.dma_semaphore, #tpu.memory_space<semaphore_mem>>)
    %c0 = arith.constant 0 : index
    %c0_3 = arith.constant 0 : index
    %c0_4 = arith.constant 0 : index
    %3 = vector.load %arg6[%c0, %c0_3, %c0_4] : memref<2x16x256xf32, #tpu.memory_space<vmem>>, vector<2x16x256xf32>
    %4 = vector.shape_cast %3 : vector<2x16x256xf32> to vector<32x256xf32>
    %c0_5 = arith.constant 0 : index
    %c0_6 = arith.constant 0 : index
    %5 = vector.load %arg1[%c0_5, %c0_6] : memref<256x50xf32, #tpu.memory_space<vmem>>, vector<256x50xf32>
    %cst = arith.constant dense<0.000000e+00> : vector<32x50xf32>
    %6 = tpu.matmul %4, %5, %cst {dimension_numbers = #tpu.dot_dimension_numbers<[1], [0], [0], [1], [0, 0, 1, 1], [], []>} : vector<32x256xf32>, vector<256x50xf32>, vector<32x50xf32> -> vector<32x50xf32>
    %c0_7 = arith.constant 0 : index
    %c0_8 = arith.constant 0 : index
    %7 = vector.load %arg3[%c0_7, %c0_8] : memref<16x16xf32, #tpu.memory_space<vmem>>, vector<16x16xf32>
    %c0_9 = arith.constant 0 : index
    %c0_10 = arith.constant 0 : index
    %8 = vector.load %arg4[%c0_9, %c0_10] : memref<16x1xf32, #tpu.memory_space<vmem>>, vector<16x1xf32>
    %c0_11 = arith.constant 0 : index
    %c0_12 = arith.constant 0 : index
    %9 = vector.load %arg5[%c0_11, %c0_12] : memref<16x50xf32, #tpu.memory_space<vmem>>, vector<16x50xf32>
    %c0_13 = arith.constant 0 : index
    %c0_14 = arith.constant 0 : index
    %10 = vector.load %arg2[%c0_13, %c0_14] : memref<50x256xf32, #tpu.memory_space<vmem>>, vector<50x256xf32>
    %11 = vector.extract_strided_slice %6 {offsets = [0, 0], sizes = [16, 50], strides = [1, 1]} : vector<32x50xf32> to vector<16x50xf32>
    %cst_15 = arith.constant dense<0.000000e+00> : vector<16x50xf32>
    %12 = tpu.matmul %7, %11, %cst_15 {dimension_numbers = #tpu.dot_dimension_numbers<[1], [0], [0], [1], [0, 0, 1, 1], [], []>} : vector<16x16xf32>, vector<16x50xf32>, vector<16x50xf32> -> vector<16x50xf32>
    %13 = vector.broadcast %8 : vector<16x1xf32> to vector<16x50xf32>
    %14 = arith.addf %12, %13 : vector<16x50xf32>
    %cst_16 = arith.constant 0.000000e+00 : f32
    %15 = vector.broadcast %cst_16 : f32 to vector<16x50xf32>
    %16 = arith.maximumf %14, %15 : vector<16x50xf32>
    %17 = arith.mulf %16, %9 : vector<16x50xf32>
    %cst_17 = arith.constant dense<0.000000e+00> : vector<16x256xf32>
    %18 = tpu.matmul %17, %10, %cst_17 {dimension_numbers = #tpu.dot_dimension_numbers<[1], [0], [0], [1], [0, 0, 1, 1], [], []>} : vector<16x50xf32>, vector<50x256xf32>, vector<16x256xf32> -> vector<16x256xf32>
    %c0_18 = arith.constant 0 : index
    %c16 = arith.constant 16 : index
    %c0_19 = arith.constant 0 : index
    %19 = vector.load %arg7[%c0_18, %c16, %c0_19] : memref<2x32x256xf32, #tpu.memory_space<vmem>>, vector<1x16x256xf32>
    %20 = vector.shape_cast %19 : vector<1x16x256xf32> to vector<16x256xf32>
    %21 = vector.shape_cast %18 : vector<16x256xf32> to vector<1x16x256xf32>
    tpu.vector_store %arg7[%c0_18, %c16, %c0_19], %21 {strides = array<i32>} : memref<2x32x256xf32, #tpu.memory_space<vmem>>, vector<1x16x256xf32>,
    %22 = vector.extract_strided_slice %6 {offsets = [16, 0], sizes = [16, 50], strides = [1, 1]} : vector<32x50xf32> to vector<16x50xf32>
    %cst_20 = arith.constant dense<0.000000e+00> : vector<16x50xf32>
    %23 = tpu.matmul %7, %22, %cst_20 {dimension_numbers = #tpu.dot_dimension_numbers<[1], [0], [0], [1], [0, 0, 1, 1], [], []>} : vector<16x16xf32>, vector<16x50xf32>, vector<16x50xf32> -> vector<16x50xf32>
    %24 = vector.broadcast %8 : vector<16x1xf32> to vector<16x50xf32>
    %25 = arith.addf %23, %24 : vector<16x50xf32>
    %cst_21 = arith.constant 0.000000e+00 : f32
    %26 = vector.broadcast %cst_21 : f32 to vector<16x50xf32>
    %27 = arith.maximumf %25, %26 : vector<16x50xf32>
    %28 = arith.mulf %27, %9 : vector<16x50xf32>
    %cst_22 = arith.constant dense<0.000000e+00> : vector<16x256xf32>
    %29 = tpu.matmul %28, %10, %cst_22 {dimension_numbers = #tpu.dot_dimension_numbers<[1], [0], [0], [1], [0, 0, 1, 1], [], []>} : vector<16x50xf32>, vector<50x256xf32>, vector<16x256xf32> -> vector<16x256xf32>
    %c1 = arith.constant 1 : index
    %c16_23 = arith.constant 16 : index
    %c0_24 = arith.constant 0 : index
    %30 = vector.load %arg7[%c1, %c16_23, %c0_24] : memref<2x32x256xf32, #tpu.memory_space<vmem>>, vector<1x16x256xf32>
    %31 = vector.shape_cast %30 : vector<1x16x256xf32> to vector<16x256xf32>
    %32 = vector.shape_cast %29 : vector<16x256xf32> to vector<1x16x256xf32>
    tpu.vector_store %arg7[%c1, %c16_23, %c0_24], %32 {strides = array<i32>} : memref<2x32x256xf32, #tpu.memory_space<vmem>>, vector<1x16x256xf32>,
    %c0_i32_25 = arith.constant 0 : i32
    %c0_i32_26 = arith.constant 0 : i32
    %c0_i32_27 = arith.constant 0 : i32
    %c0_i32_28 = arith.constant 0 : i32
    %33 = tpu.memref_slice %arg7[%c0_i32_26, %c0_i32_27, %c0_i32_28] : memref<2x32x256xf32, #tpu.memory_space<vmem>> -> memref<2x16x256xf32, #tpu.memory_space<vmem>>
    %34 = tpu.memref_slice %arg8[%c0_i32_25] : memref<1x!tpu.dma_semaphore, #tpu.memory_space<semaphore_mem>> -> memref<1x!tpu.dma_semaphore, #tpu.memory_space<semaphore_mem>>
    %35 = tpu.memref_squeeze %34 : memref<1x!tpu.dma_semaphore, #tpu.memory_space<semaphore_mem>> -> memref<!tpu.dma_semaphore, #tpu.memory_space<semaphore_mem>>
    tpu.wait_dma2 semaphore(%35 : memref<!tpu.dma_semaphore, #tpu.memory_space<semaphore_mem>>) src(%arg6 : memref<2x16x256xf32, #tpu.memory_space<vmem>>) dst(%33 : memref<2x16x256xf32, #tpu.memory_space<vmem>>)
    return
  }
  func.func @transform_0(%arg0: i32) -> (i32, i32) {
    %c0_i32 = arith.constant 0 : i32
    %c0_i32_0 = arith.constant 0 : i32
    %c0_i32_1 = arith.constant 0 : i32
    return %c0_i32, %c0_i32_0 : i32, i32
  }
  func.func @transform_1(%arg0: i32) -> (i32, i32) {
    %c0_i32 = arith.constant 0 : i32
    %c0_i32_0 = arith.constant 0 : i32
    %c0_i32_1 = arith.constant 0 : i32
    return %c0_i32, %c0_i32_0 : i32, i32
  }
  func.func @transform_2(%arg0: i32) -> (i32, i32) {
    %c0_i32 = arith.constant 0 : i32
    %c0_i32_0 = arith.constant 0 : i32
    %c0_i32_1 = arith.constant 0 : i32
    return %c0_i32, %c0_i32_0 : i32, i32
  }
  func.func @transform_3(%arg0: i32) -> (i32, i32) {
    %c0_i32 = arith.constant 0 : i32
    %c0_i32_0 = arith.constant 0 : i32
    %c0_i32_1 = arith.constant 0 : i32
    return %c0_i32, %c0_i32_0 : i32, i32
  }
  func.func @transform_4(%arg0: i32) -> (i32, i32) {
    %c0_i32 = arith.constant 0 : i32
    %c0_i32_0 = arith.constant 0 : i32
    %c0_i32_1 = arith.constant 0 : i32
    return %c0_i32, %c0_i32_0 : i32, i32
  }
  func.func @transform_5(%arg0: i32) -> (i32, i32, i32) {
    %c0_i32 = arith.constant 0 : i32
    %c0_i32_0 = arith.constant 0 : i32
    %c0_i32_1 = arith.constant 0 : i32
    return %arg0, %c0_i32, %c0_i32_0 : i32, i32, i32
  }
  func.func @transform_6(%arg0: i32) -> (i32, i32, i32) {
    %c0_i32 = arith.constant 0 : i32
    %c0_i32_0 = arith.constant 0 : i32
    %c0_i32_1 = arith.constant 0 : i32
    return %arg0, %c0_i32, %c0_i32_0 : i32, i32, i32
  }
}

</mosaic_0001>

<llo_original>
// kernel: tpu_custom_call.1
$region0: #{tpu_custom_call.1}
  #allocation0 [shape = 'u32[]', space=smem, size = 0x4, offset = 0x4, fixed_abs, tag = 'smem constant byte address 0x4 - core index']
  #allocation1 [shape = 'u32[144,128]{1,0:T(1,128)}', space=vmem, size = 0x12000, scoped, tag = 'internal scratch']
  #allocation2 [shape = 's32[1]{0}', space=sflag, size = 0x4, scoped, tag = 'scratch operand']
  #allocation5 [shape = 's32[]', space=sflag, size = 0x4, offset = 0, fixed_abs, tag = 'sflag constant byte address 0x0 - dummy sync flag']
  %s0 = inlined_call_operand.vmem [shape: f32[256,50], index: 0, kind: input, shape index: {}]
  %s1 = inlined_call_operand.vmem [shape: f32[50,256], index: 1, kind: input, shape index: {}]
  %s2 = inlined_call_operand.vmem [shape: f32[16,16], index: 2, kind: input, shape index: {}]
  %s3 = inlined_call_operand.vmem [shape: f32[16,1], index: 3, kind: input, shape index: {}]
  %s4 = inlined_call_operand.vmem [shape: f32[16,50], index: 4, kind: input, shape index: {}]
  %s5 = inlined_call_operand.vmem [shape: f32[2,16,256], index: 5, kind: input, shape index: {}]
  %s6 = inlined_call_operand.hbm [shape: f32[2,32,256], index: 6, kind: output, shape index: {}]
  %s7 = sld [smem:[#allocation0]]
  $region68: #{tpu_custom_call.1} parent=0
    _
  %s9 = ssub.s32 1, %s7
  %s10 = scalar_select 0, %s9, %s7
  $region1: #{tpu_custom_call.1} parent=0
    #allocation3 [shape = 'u8[65536]{0}', space=vmem, size = 0x10000, scoped, tag = 'output window, operand 0, single buffered']
    #allocation4 [shape = 's32[1]{0}', space=sflag, size = 0x4, scoped, tag = 'scoped memory for tpu_custom_call.1']
    %11 = vsyncpa [#allocation4], 0
    // Predicated region
    $region2: #{tpu_custom_call.1} parent=1 // pred_check
      _
    $region3: #{tpu_custom_call.1} parent=1 // pred_check_branch
      %13 = sbr.rel (0) target = $region5
    $region4: #{tpu_custom_call.1} parent=1 // pred_region
      _
    $region5: #{tpu_custom_call.1} parent=1 // pred_fallthru
      _
    // Predicated region
    $region6: #{tpu_custom_call.1} parent=1 // pred_check
      _
    $region7: #{tpu_custom_call.1} parent=1 // pred_check_branch
      %15 = sbr.rel (0) target = $region9
    $region8: #{tpu_custom_call.1} parent=1 // pred_region
      _
    $region9: #{tpu_custom_call.1} parent=1 // pred_fallthru
      _
    // Predicated region
    $region10: #{tpu_custom_call.1} parent=1 // pred_check
      _
    $region11: #{tpu_custom_call.1} parent=1 // pred_check_branch
      %17 = sbr.rel (0) target = $region13
    $region12: #{tpu_custom_call.1} parent=1 // pred_region
      _
    $region13: #{tpu_custom_call.1} parent=1 // pred_fallthru
      _
    // Predicated region
    $region14: #{tpu_custom_call.1} parent=1 // pred_check
      _
    $region15: #{tpu_custom_call.1} parent=1 // pred_check_branch
      %19 = sbr.rel (0) target = $region17
    $region16: #{tpu_custom_call.1} parent=1 // pred_region
      _
    $region17: #{tpu_custom_call.1} parent=1 // pred_fallthru
      _
    // Predicated region
    $region18: #{tpu_custom_call.1} parent=1 // pred_check
      _
    $region19: #{tpu_custom_call.1} parent=1 // pred_check_branch
      %21 = sbr.rel (0) target = $region21
    $region20: #{tpu_custom_call.1} parent=1 // pred_region
      _
    $region21: #{tpu_custom_call.1} parent=1 // pred_fallthru
      _
    // Predicated region
    $region22: #{tpu_custom_call.1} parent=1 // pred_check
      _
    $region23: #{tpu_custom_call.1} parent=1 // pred_check_branch
      %23 = sbr.rel (0) target = $region25
    $region24: #{tpu_custom_call.1} parent=1 // pred_region
      _
    $region25: #{tpu_custom_call.1} parent=1 // pred_fallthru
      _
    %p25 = scmp.lt.u32.totalorder 32, 8
    %p26 = pneg %p25
    // Predicated region
    $region26: #{tpu_custom_call.1} parent=1 // pred_check
      _
    $region27: #{tpu_custom_call.1} parent=1 // pred_check_branch
      %28 = sbr.rel (%p25) target = $region29
    $region28: #{tpu_custom_call.1} parent=1 // pred_region
      %s46 = sand.u32 32, 7
      %p47 = scmp.eq.s32.totalorder %s46, 0
      // Predicated region
      $region41: #{tpu_custom_call.1} parent=28 // pred_check
        %p48 = pneg %p47
      $region42: #{tpu_custom_call.1} parent=28 // pred_check_branch
        %50 = sbr.rel (%p48) target = $region44
      $region43: #{tpu_custom_call.1} parent=28 // pred_region
        loop: start=0, step=1, limit=1
        $region45: #{tpu_custom_call.1} parent=43 // loop_pre_header
          _
        $region46: #{tpu_custom_call.1} parent=43 // loop_header
          %s52 = sphi 0, %s56
          %p53 = scmp.ge.s32.totalorder %s52, 1
          %s57 = sphi %s5, %s5
          %s58 = sphi [#allocation3], [#allocation3]
        $region47: #{tpu_custom_call.1} parent=43 // loop_header_branch
          %55 = sbr.rel (%p53) target = $region51
        $region48: #{tpu_custom_call.1} parent=43 // loop_body
          %v59 = vld [vmem:[%s57] sm:$0xff]
          %60 = vst [vmem:[%s58] sm:$0xff] %v59
          %v61 = vld [vmem:[%s57 + $0x8] sm:$0xff]
          %62 = vst [vmem:[%s58 + $0x8] sm:$0xff] %v61
          %v63 = vld [vmem:[%s57 + $0x10] sm:$0xff]
          %64 = vst [vmem:[%s58 + $0x10] sm:$0xff] %v63
          %v65 = vld [vmem:[%s57 + $0x18] sm:$0xff]
          %66 = vst [vmem:[%s58 + $0x18] sm:$0xff] %v65
          %v67 = vld [vmem:[%s57 + $0x20] sm:$0xff]
          %68 = vst [vmem:[%s58 + $0x40] sm:$0xff] %v67
          %v69 = vld [vmem:[%s57 + $0x28] sm:$0xff]
          %70 = vst [vmem:[%s58 + $0x48] sm:$0xff] %v69
          %v71 = vld [vmem:[%s57 + $0x30] sm:$0xff]
          %72 = vst [vmem:[%s58 + $0x50] sm:$0xff] %v71
          %v73 = vld [vmem:[%s57 + $0x38] sm:$0xff]
          %74 = vst [vmem:[%s58 + $0x58] sm:$0xff] %v73
        $region49: #{tpu_custom_call.1} parent=43 // loop_footer
          %s56 = sadd.s32 1, %s52
        $region50: #{tpu_custom_call.1} parent=43 // loop_footer_branch
          %51 = sbr.rel target = $region46
        $region51: #{tpu_custom_call.1} parent=43 // loop_exit
          _
      $region44: #{tpu_custom_call.1} parent=28 // pred_fallthru
        _
      %p75 = pneg %p47
      // Predicated region
      $region52: #{tpu_custom_call.1} parent=28 // pred_check
        _
      $region53: #{tpu_custom_call.1} parent=28 // pred_check_branch
        %77 = sbr.rel (%p47) target = $region55
      $region54: #{tpu_custom_call.1} parent=28 // pred_region
        %s78 = sand.u32 32, 7
      $region55: #{tpu_custom_call.1} parent=28 // pred_fallthru
        _
    $region29: #{tpu_custom_call.1} parent=1 // pred_fallthru
      _
    // Predicated region
    $region30: #{tpu_custom_call.1} parent=1 // pred_check
      %p29 = pneg %p25
    $region31: #{tpu_custom_call.1} parent=1 // pred_check_branch
      %31 = sbr.rel (%p29) target = $region33
    $region32: #{tpu_custom_call.1} parent=1 // pred_region
      %s32 = sshll.u32 1, 32
      %s33 = ssub.s32 %s32, 1
      loop: start=0, step=1, limit=1
      $region34: #{tpu_custom_call.1} parent=32 // loop_pre_header
        _
      $region35: #{tpu_custom_call.1} parent=32 // loop_header
        %s35 = sphi 0, %s39
        %p36 = scmp.ge.s32.totalorder %s35, 1
        %s40 = sphi %s5, %s5
        %s41 = sphi [#allocation3], [#allocation3]
      $region36: #{tpu_custom_call.1} parent=32 // loop_header_branch
        %38 = sbr.rel (%p36) target = $region40
      $region37: #{tpu_custom_call.1} parent=32 // loop_body
        %v42 = vld [vmem:[%s40] sm:%s33]
        %43 = vst [vmem:[%s41] sm:%s33] %v42
        %v44 = vld [vmem:[%s40 + $0x20] sm:%s33]
        %45 = vst [vmem:[%s41 + $0x40] sm:%s33] %v44
      $region38: #{tpu_custom_call.1} parent=32 // loop_footer
        %s39 = sadd.s32 1, %s35
      $region39: #{tpu_custom_call.1} parent=32 // loop_footer_branch
        %34 = sbr.rel target = $region35
      $region40: #{tpu_custom_call.1} parent=32 // loop_exit
        _
    $region33: #{tpu_custom_call.1} parent=1 // pred_fallthru
      _
    // Predicated region
    $region56: #{tpu_custom_call.1} parent=1 // pred_check
      _
    $region57: #{tpu_custom_call.1} parent=1 // pred_check_branch
      %81 = sbr.rel (0) target = $region59
    $region58: #{tpu_custom_call.1} parent=1 // pred_region
      %82 = vsyncadd [#allocation2], 1024
    $region59: #{tpu_custom_call.1} parent=1 // pred_fallthru
      _
    %v83 = vld [vmem:[%s5] sm:$0xff]
    %v84 = vld [vmem:[%s5 + $0x8] sm:$0xff]
    %v85 = vld [vmem:[%s5 + $0x10] sm:$0xff]
    %v86 = vld [vmem:[%s5 + $0x18] sm:$0xff]
    %v87 = vld [vmem:[%s5 + $0x20] sm:$0xff]
    %v88 = vld [vmem:[%s5 + $0x28] sm:$0xff]
    %v89 = vld [vmem:[%s5 + $0x30] sm:$0xff]
    %v90 = vld [vmem:[%s5 + $0x38] sm:$0xff]
    %v91 = vld [vmem:[%s0] sm:$0xff]
    %v92 = vld [vmem:[%s0 + $0x8] sm:$0xff]
    %v93 = vld [vmem:[%s0 + $0x10] sm:$0xff]
    %v94 = vld [vmem:[%s0 + $0x18] sm:$0xff]
    %v95 = vld [vmem:[%s0 + $0x20] sm:$0xff]
    %v96 = vld [vmem:[%s0 + $0x28] sm:$0xff]
    %v97 = vld [vmem:[%s0 + $0x30] sm:$0xff]
    %v98 = vld [vmem:[%s0 + $0x38] sm:$0xff]
    %v99 = vld [vmem:[%s0 + $0x40] sm:$0xff]
    %v100 = vld [vmem:[%s0 + $0x48] sm:$0xff]
    %v101 = vld [vmem:[%s0 + $0x50] sm:$0xff]
    %v102 = vld [vmem:[%s0 + $0x58] sm:$0xff]
    %v103 = vld [vmem:[%s0 + $0x60] sm:$0xff]
    %v104 = vld [vmem:[%s0 + $0x68] sm:$0xff]
    %v105 = vld [vmem:[%s0 + $0x70] sm:$0xff]
    %v106 = vld [vmem:[%s0 + $0x78] sm:$0xff]
    %v107 = vld [vmem:[%s0 + $0x80] sm:$0xff]
    %v108 = vld [vmem:[%s0 + $0x88] sm:$0xff]
    %v109 = vld [vmem:[%s0 + $0x90] sm:$0xff]
    %v110 = vld [vmem:[%s0 + $0x98] sm:$0xff]
    %v111 = vld [vmem:[%s0 + $0xa0] sm:$0xff]
    %v112 = vld [vmem:[%s0 + $0xa8] sm:$0xff]
    %v113 = vld [vmem:[%s0 + $0xb0] sm:$0xff]
    %v114 = vld [vmem:[%s0 + $0xb8] sm:$0xff]
    %v115 = vld [vmem:[%s0 + $0xc0] sm:$0xff]
    %v116 = vld [vmem:[%s0 + $0xc8] sm:$0xff]
    %v117 = vld [vmem:[%s0 + $0xd0] sm:$0xff]
    %v118 = vld [vmem:[%s0 + $0xd8] sm:$0xff]
    %v119 = vld [vmem:[%s0 + $0xe0] sm:$0xff]
    %v120 = vld [vmem:[%s0 + $0xe8] sm:$0xff]
    %v121 = vld [vmem:[%s0 + $0xf0] sm:$0xff]
    %v122 = vld [vmem:[%s0 + $0xf8] sm:$0xff]
    %123 = vmatprep.subr.mxu0 0.0
    %124 = vmatpush1.msra.mxu0 %v106
    %125 = vmatprep.subr.mxu0 0.0
    %126 = vmatpush1.msra.mxu0 %v105
    %127 = vmatprep.subr.mxu0 0.0
    %128 = vmatpush1.msra.mxu0 %v104
    %129 = vmatprep.subr.mxu0 0.0
    %130 = vmatpush1.msra.mxu0 %v103
    %131 = vmatprep.subr.mxu0 0.0
    %132 = vmatpush1.msra.mxu0 %v102
    %133 = vmatprep.subr.mxu0 0.0
    %134 = vmatpush1.msra.mxu0 %v101
    %135 = vmatprep.subr.mxu0 0.0
    %136 = vmatpush1.msra.mxu0 %v100
    %137 = vmatprep.subr.mxu0 0.0
    %138 = vmatpush1.msra.mxu0 %v99
    %139 = vmatprep.subr.mxu0 0.0
    %140 = vmatpush1.msra.mxu0 %v98
    %141 = vmatprep.subr.mxu0 0.0
    %142 = vmatpush1.msra.mxu0 %v97
    %143 = vmatprep.subr.mxu0 0.0
    %144 = vmatpush1.msra.mxu0 %v96
    %145 = vmatprep.subr.mxu0 0.0
    %146 = vmatpush1.msra.mxu0 %v95
    %147 = vmatprep.subr.mxu0 0.0
    %148 = vmatpush1.msra.mxu0 %v94
    %149 = vmatprep.subr.mxu0 0.0
    %150 = vmatpush1.msra.mxu0 %v93
    %151 = vmatprep.subr.mxu0 0.0
    %152 = vmatpush1.msra.mxu0 %v92
    %153 = vmatprep.subr.mxu0 0.0
    %154 = vmatpush1.msra.mxu0 %v91
    %155 = vmatprep.subr.mxu0 0.0
    %156 = vmatpush2.msra.mxu0 %v122
    %157 = vmatprep.subr.mxu0 0.0
    %158 = vmatpush2.msra.mxu0 %v121
    %159 = vmatprep.subr.mxu0 0.0
    %160 = vmatpush2.msra.mxu0 %v120
    %161 = vmatprep.subr.mxu0 0.0
    %162 = vmatpush2.msra.mxu0 %v119
    %163 = vmatprep.subr.mxu0 0.0
    %164 = vmatpush2.msra.mxu0 %v118
    %165 = vmatprep.subr.mxu0 0.0
    %166 = vmatpush2.msra.mxu0 %v117
    %167 = vmatprep.subr.mxu0 0.0
    %168 = vmatpush2.msra.mxu0 %v116
    %169 = vmatprep.subr.mxu0 0.0
    %170 = vmatpush2.msra.mxu0 %v115
    %171 = vmatprep.subr.mxu0 0.0
    %172 = vmatpush2.msra.mxu0 %v114
    %173 = vmatprep.subr.mxu0 0.0
    %174 = vmatpush2.msra.mxu0 %v113
    %175 = vmatprep.subr.mxu0 0.0
    %176 = vmatpush2.msra.mxu0 %v112
    %177 = vmatprep.subr.mxu0 0.0
    %178 = vmatpush2.msra.mxu0 %v111
    %179 = vmatprep.subr.mxu0 0.0
    %180 = vmatpush2.msra.mxu0 %v110
    %181 = vmatprep.subr.mxu0 0.0
    %182 = vmatpush2.msra.mxu0 %v109
    %183 = vmatprep.subr.mxu0 0.0
    %184 = vmatpush2.msra.mxu0 %v108
    %185 = vmatprep.subr.mxu0 0.0
    %186 = vmatpush2.msra.mxu0 %v107
    %187 = vmatprep.mubr.f32.mxu0 %v84
    %188 = vmatmul.mubr.f32.gmra.mxu0 %v83
    %v189 = vpop.f32.mrf.mxu0
    %v190 = vadd.f32 0.0, %v189
    %v191 = vpop.f32.mrf.mxu0
    %192 = vmatprep.mubr.f32.mxu0 %v86
    %193 = vmatmul.mubr.f32.gmra.mxu0 %v85
    %v194 = vpop.f32.mrf.mxu0
    %v195 = vadd.f32 0.0, %v194
    %v196 = vpop.f32.mrf.mxu0
    %197 = vmatprep.mubr.f32.mxu0 %v88
    %198 = vmatmul.mubr.f32.gmra.mxu0 %v87
    %v199 = vpop.f32.mrf.mxu0
    %v200 = vadd.f32 0.0, %v199
    %v201 = vpop.f32.mrf.mxu0
    %202 = vmatprep.mubr.f32.mxu0 %v90
    %203 = vmatmul.mubr.f32.gmra.mxu0 %v89
    %v204 = vpop.f32.mrf.mxu0
    %v205 = vadd.f32 0.0, %v204
    %v206 = vpop.f32.mrf.mxu0
    %207 = vdwg.mxu0
    %v208 = vld [vmem:[%s2] sm:$0xff]
    %v209 = vld [vmem:[%s2 + $0x8] sm:$0xff]
    %v210 = vld [vmem:[%s3] sm:$0xff]
    %v211 = vld [vmem:[%s3 + $0x8] sm:$0xff]
    %v212 = vld [vmem:[%s4] sm:$0xff]
    %v213 = vld [vmem:[%s4 + $0x8] sm:$0xff]
    %v214 = vld [vmem:[%s1] sm:$0xff]
    %v215 = vld [vmem:[%s1 + $0x8] sm:$0xff]
    %v216 = vld [vmem:[%s1 + $0x10] sm:$0xff]
    %v217 = vld [vmem:[%s1 + $0x18] sm:$0xff]
    %v218 = vld [vmem:[%s1 + $0x20] sm:$0xff]
    %v219 = vld [vmem:[%s1 + $0x28] sm:$0xff]
    %v220 = vld [vmem:[%s1 + $0x30] sm:$0xff]
    %v221 = vld [vmem:[%s1 + $0x38] sm:$0xff]
    %v222 = vld [vmem:[%s1 + $0x40] sm:$0xff]
    %v223 = vld [vmem:[%s1 + $0x48] sm:$0xff]
    %v224 = vld [vmem:[%s1 + $0x50] sm:$0xff]
    %v225 = vld [vmem:[%s1 + $0x58] sm:$0xff]
    %v226 = vld [vmem:[%s1 + $0x60] sm:$0x3]
    %v227 = vld [vmem:[%s1 + $0x68] sm:$0x3]
    %229 = vset.pattern.permute.xlu0 0
    %230 = vperm.xlu0 %229, %v210
    %v231 = vpop.permute.xlu0 %230
    %234 = vset.pattern.permute.xlu0 0
    %235 = vperm.xlu0 %234, %v211
    %v236 = vpop.permute.xlu0 %235
    %vm238 = vcmask 130048
    %v240 = vsel %vm238, %v208, 0
    %v243 = vsel %vm238, %v209, 0
    %245 = vmatprep.subr.mxu0 0.0
    %246 = vmatpush1.msra.mxu0 0.0
    %247 = vmatprep.subr.mxu0 0.0
    %248 = vmatpush1.msra.mxu0 0.0
    %249 = vmatprep.subr.mxu0 0.0
    %250 = vmatpush1.msra.mxu0 0.0
    %251 = vmatprep.subr.mxu0 0.0
    %252 = vmatpush1.msra.mxu0 0.0
    %253 = vmatprep.subr.mxu0 0.0
    %254 = vmatpush1.msra.mxu0 0.0
    %255 = vmatprep.subr.mxu0 0.0
    %256 = vmatpush1.msra.mxu0 0.0
    %257 = vmatprep.subr.mxu0 0.0
    %258 = vmatpush1.msra.mxu0 0.0
    %259 = vmatprep.subr.mxu0 0.0
    %260 = vmatpush1.msra.mxu0 0.0
    %261 = vmatprep.subr.mxu0 0.0
    %262 = vmatpush1.msra.mxu0 0.0
    %263 = vmatprep.subr.mxu0 0.0
    %264 = vmatpush1.msra.mxu0 0.0
    %265 = vmatprep.subr.mxu0 0.0
    %266 = vmatpush1.msra.mxu0 0.0
    %267 = vmatprep.subr.mxu0 0.0
    %268 = vmatpush1.msra.mxu0 0.0
    %269 = vmatprep.subr.mxu0 0.0
    %270 = vmatpush1.msra.mxu0 0.0
    %271 = vmatprep.subr.mxu0 0.0
    %272 = vmatpush1.msra.mxu0 0.0
    %273 = vmatprep.subr.mxu0 0.0
    %274 = vmatpush1.msra.mxu0 %v195
    %275 = vmatprep.subr.mxu0 0.0
    %276 = vmatpush1.msra.mxu0 %v190
    %277 = vmatprep.subr.mxu0 0.0
    %278 = vmatpush2.msra.mxu0 0.0
    %279 = vmatprep.subr.mxu0 0.0
    %280 = vmatpush2.msra.mxu0 0.0
    %281 = vmatprep.subr.mxu0 0.0
    %282 = vmatpush2.msra.mxu0 0.0
    %283 = vmatprep.subr.mxu0 0.0
    %284 = vmatpush2.msra.mxu0 0.0
    %285 = vmatprep.subr.mxu0 0.0
    %286 = vmatpush2.msra.mxu0 0.0
    %287 = vmatprep.subr.mxu0 0.0
    %288 = vmatpush2.msra.mxu0 0.0
    %289 = vmatprep.subr.mxu0 0.0
    %290 = vmatpush2.msra.mxu0 0.0
    %291 = vmatprep.subr.mxu0 0.0
    %292 = vmatpush2.msra.mxu0 0.0
    %293 = vmatprep.subr.mxu0 0.0
    %294 = vmatpush2.msra.mxu0 0.0
    %295 = vmatprep.subr.mxu0 0.0
    %296 = vmatpush2.msra.mxu0 0.0
    %297 = vmatprep.subr.mxu0 0.0
    %298 = vmatpush2.msra.mxu0 0.0
    %299 = vmatprep.subr.mxu0 0.0
    %300 = vmatpush2.msra.mxu0 0.0
    %301 = vmatprep.subr.mxu0 0.0
    %302 = vmatpush2.msra.mxu0 0.0
    %303 = vmatprep.subr.mxu0 0.0
    %304 = vmatpush2.msra.mxu0 0.0
    %305 = vmatprep.subr.mxu0 0.0
    %306 = vmatpush2.msra.mxu0 0.0
    %307 = vmatprep.subr.mxu0 0.0
    %308 = vmatpush2.msra.mxu0 0.0
    %309 = vmatprep.mubr.f32.mxu0 0.0
    %310 = vmatmul.mubr.f32.gmra.mxu0 %v240
    %v311 = vpop.f32.mrf.mxu0
    %v312 = vadd.f32 %v231, %v311
    %v313 = vpop.f32.mrf.mxu0
    %314 = vmatprep.mubr.f32.mxu0 0.0
    %315 = vmatmul.mubr.f32.gmra.mxu0 %v243
    %v316 = vpop.f32.mrf.mxu0
    %v317 = vadd.f32 %v236, %v316
    %v318 = vpop.f32.mrf.mxu0
    %319 = vdwg.mxu0
    %v320 = vmax.f32 %v312, 0.0
    %v321 = vmax.f32 %v317, 0.0
    %v322 = vmul.f32 %v320, %v212
    %v323 = vmul.f32 %v321, %v213
    %vm324 = vcmask 408576
    %v326 = vsel %vm324, %v322, 0
    %v329 = vsel %vm324, %v323, 0
    %vm331 = vcmask 1041408
    %v333 = vsel %vm331, %v226, 0
    %v336 = vsel %vm331, %v227, 0
    %338 = vmatprep.subr.mxu0 0.0
    %339 = vmatpush1.msra.mxu0 0.0
    %340 = vmatprep.subr.mxu0 0.0
    %341 = vmatpush1.msra.mxu0 0.0
    %342 = vmatprep.subr.mxu0 0.0
    %343 = vmatpush1.msra.mxu0 0.0
    %344 = vmatprep.subr.mxu0 0.0
    %345 = vmatpush1.msra.mxu0 0.0
    %346 = vmatprep.subr.mxu0 0.0
    %347 = vmatpush1.msra.mxu0 0.0
    %348 = vmatprep.subr.mxu0 0.0
    %349 = vmatpush1.msra.mxu0 0.0
    %350 = vmatprep.subr.mxu0 0.0
    %351 = vmatpush1.msra.mxu0 0.0
    %352 = vmatprep.subr.mxu0 0.0
    %353 = vmatpush1.msra.mxu0 0.0
    %354 = vmatprep.subr.mxu0 0.0
    %355 = vmatpush1.msra.mxu0 0.0
    %356 = vmatprep.subr.mxu0 %v336
    %357 = vmatpush1.msra.mxu0 %v333
    %358 = vmatprep.subr.mxu0 %v225
    %359 = vmatpush1.msra.mxu0 %v224
    %360 = vmatprep.subr.mxu0 %v223
    %361 = vmatpush1.msra.mxu0 %v222
    %362 = vmatprep.subr.mxu0 %v221
    %363 = vmatpush1.msra.mxu0 %v220
    %364 = vmatprep.subr.mxu0 %v219
    %365 = vmatpush1.msra.mxu0 %v218
    %366 = vmatprep.subr.mxu0 %v217
    %367 = vmatpush1.msra.mxu0 %v216
    %368 = vmatprep.subr.mxu0 %v215
    %369 = vmatpush1.msra.mxu0 %v214
    %370 = vmatprep.subr.mxu0 0.0
    %371 = vmatpush2.msra.mxu0 0.0
    %372 = vmatprep.subr.mxu0 0.0
    %373 = vmatpush2.msra.mxu0 0.0
    %374 = vmatprep.subr.mxu0 0.0
    %375 = vmatpush2.msra.mxu0 0.0
    %376 = vmatprep.subr.mxu0 0.0
    %377 = vmatpush2.msra.mxu0 0.0
    %378 = vmatprep.subr.mxu0 0.0
    %379 = vmatpush2.msra.mxu0 0.0
    %380 = vmatprep.subr.mxu0 0.0
    %381 = vmatpush2.msra.mxu0 0.0
    %382 = vmatprep.subr.mxu0 0.0
    %383 = vmatpush2.msra.mxu0 0.0
    %384 = vmatprep.subr.mxu0 0.0
    %385 = vmatpush2.msra.mxu0 0.0
    %386 = vmatprep.subr.mxu0 0.0
    %387 = vmatpush2.msra.mxu0 0.0
    %388 = vmatprep.subr.mxu0 0.0
    %389 = vmatpush2.msra.mxu0 0.0
    %390 = vmatprep.subr.mxu0 0.0
    %391 = vmatpush2.msra.mxu0 0.0
    %392 = vmatprep.subr.mxu0 0.0
    %393 = vmatpush2.msra.mxu0 0.0
    %394 = vmatprep.subr.mxu0 0.0
    %395 = vmatpush2.msra.mxu0 0.0
    %396 = vmatprep.subr.mxu0 0.0
    %397 = vmatpush2.msra.mxu0 0.0
    %398 = vmatprep.subr.mxu0 0.0
    %399 = vmatpush2.msra.mxu0 0.0
    %400 = vmatprep.subr.mxu0 0.0
    %401 = vmatpush2.msra.mxu0 0.0
    %402 = vmatprep.mubr.f32.mxu0 0.0
    %403 = vmatmul.mubr.f32.gmra.mxu0 %v326
    %v404 = vpop.f32.mrf.mxu0
    %v405 = vadd.f32 0.0, %v404
    %v406 = vpop.f32.mrf.mxu0
    %v407 = vadd.f32 0.0, %v406
    %408 = vmatprep.mubr.f32.mxu0 0.0
    %409 = vmatmul.mubr.f32.gmra.mxu0 %v329
    %v410 = vpop.f32.mrf.mxu0
    %v411 = vadd.f32 0.0, %v410
    %v412 = vpop.f32.mrf.mxu0
    %v413 = vadd.f32 0.0, %v412
    %414 = vdwg.mxu0
    %415 = vst [vmem:[#allocation3 + $0x20] sm:$0xff] %v405
    %416 = vst [vmem:[#allocation3 + $0x28] sm:$0xff] %v407
    %417 = vst [vmem:[#allocation3 + $0x30] sm:$0xff] %v411
    %418 = vst [vmem:[#allocation3 + $0x38] sm:$0xff] %v413
    %419 = vmatprep.subr.mxu0 0.0
    %420 = vmatpush1.msra.mxu0 0.0
    %421 = vmatprep.subr.mxu0 0.0
    %422 = vmatpush1.msra.mxu0 0.0
    %423 = vmatprep.subr.mxu0 0.0
    %424 = vmatpush1.msra.mxu0 0.0
    %425 = vmatprep.subr.mxu0 0.0
    %426 = vmatpush1.msra.mxu0 0.0
    %427 = vmatprep.subr.mxu0 0.0
    %428 = vmatpush1.msra.mxu0 0.0
    %429 = vmatprep.subr.mxu0 0.0
    %430 = vmatpush1.msra.mxu0 0.0
    %431 = vmatprep.subr.mxu0 0.0
    %432 = vmatpush1.msra.mxu0 0.0
    %433 = vmatprep.subr.mxu0 0.0
    %434 = vmatpush1.msra.mxu0 0.0
    %435 = vmatprep.subr.mxu0 0.0
    %436 = vmatpush1.msra.mxu0 0.0
    %437 = vmatprep.subr.mxu0 0.0
    %438 = vmatpush1.msra.mxu0 0.0
    %439 = vmatprep.subr.mxu0 0.0
    %440 = vmatpush1.msra.mxu0 0.0
    %441 = vmatprep.subr.mxu0 0.0
    %442 = vmatpush1.msra.mxu0 0.0
    %443 = vmatprep.subr.mxu0 0.0
    %444 = vmatpush1.msra.mxu0 0.0
    %445 = vmatprep.subr.mxu0 0.0
    %446 = vmatpush1.msra.mxu0 0.0
    %447 = vmatprep.subr.mxu0 0.0
    %448 = vmatpush1.msra.mxu0 %v205
    %449 = vmatprep.subr.mxu0 0.0
    %450 = vmatpush1.msra.mxu0 %v200
    %451 = vmatprep.subr.mxu0 0.0
    %452 = vmatpush2.msra.mxu0 0.0
    %453 = vmatprep.subr.mxu0 0.0
    %454 = vmatpush2.msra.mxu0 0.0
    %455 = vmatprep.subr.mxu0 0.0
    %456 = vmatpush2.msra.mxu0 0.0
    %457 = vmatprep.subr.mxu0 0.0
    %458 = vmatpush2.msra.mxu0 0.0
    %459 = vmatprep.subr.mxu0 0.0
    %460 = vmatpush2.msra.mxu0 0.0
    %461 = vmatprep.subr.mxu0 0.0
    %462 = vmatpush2.msra.mxu0 0.0
    %463 = vmatprep.subr.mxu0 0.0
    %464 = vmatpush2.msra.mxu0 0.0
    %465 = vmatprep.subr.mxu0 0.0
    %466 = vmatpush2.msra.mxu0 0.0
    %467 = vmatprep.subr.mxu0 0.0
    %468 = vmatpush2.msra.mxu0 0.0
    %469 = vmatprep.subr.mxu0 0.0
    %470 = vmatpush2.msra.mxu0 0.0
    %471 = vmatprep.subr.mxu0 0.0
    %472 = vmatpush2.msra.mxu0 0.0
    %473 = vmatprep.subr.mxu0 0.0
    %474 = vmatpush2.msra.mxu0 0.0
    %475 = vmatprep.subr.mxu0 0.0
    %476 = vmatpush2.msra.mxu0 0.0
    %477 = vmatprep.subr.mxu0 0.0
    %478 = vmatpush2.msra.mxu0 0.0
    %479 = vmatprep.subr.mxu0 0.0
    %480 = vmatpush2.msra.mxu0 0.0
    %481 = vmatprep.subr.mxu0 0.0
    %482 = vmatpush2.msra.mxu0 0.0
    %483 = vmatprep.mubr.f32.mxu0 0.0
    %484 = vmatmul.mubr.f32.gmra.mxu0 %v240
    %v485 = vpop.f32.mrf.mxu0
    %v486 = vadd.f32 %v231, %v485
    %v487 = vpop.f32.mrf.mxu0
    %488 = vmatprep.mubr.f32.mxu0 0.0
    %489 = vmatmul.mubr.f32.gmra.mxu0 %v243
    %v490 = vpop.f32.mrf.mxu0
    %v491 = vadd.f32 %v236, %v490
    %v492 = vpop.f32.mrf.mxu0
    %493 = vdwg.mxu0
    %v494 = vmax.f32 %v486, 0.0
    %v495 = vmax.f32 %v491, 0.0
    %v496 = vmul.f32 %v494, %v212
    %v497 = vmul.f32 %v495, %v213
    %v499 = vsel %vm324, %v496, 0
    %v502 = vsel %vm324, %v497, 0
    %504 = vmatprep.subr.mxu0 0.0
    %505 = vmatpush1.msra.mxu0 0.0
    %506 = vmatprep.subr.mxu0 0.0
    %507 = vmatpush1.msra.mxu0 0.0
    %508 = vmatprep.subr.mxu0 0.0
    %509 = vmatpush1.msra.mxu0 0.0
    %510 = vmatprep.subr.mxu0 0.0
    %511 = vmatpush1.msra.mxu0 0.0
    %512 = vmatprep.subr.mxu0 0.0
    %513 = vmatpush1.msra.mxu0 0.0
    %514 = vmatprep.subr.mxu0 0.0
    %515 = vmatpush1.msra.mxu0 0.0
    %516 = vmatprep.subr.mxu0 0.0
    %517 = vmatpush1.msra.mxu0 0.0
    %518 = vmatprep.subr.mxu0 0.0
    %519 = vmatpush1.msra.mxu0 0.0
    %520 = vmatprep.subr.mxu0 0.0
    %521 = vmatpush1.msra.mxu0 0.0
    %522 = vmatprep.subr.mxu0 %v336
    %523 = vmatpush1.msra.mxu0 %v333
    %524 = vmatprep.subr.mxu0 %v225
    %525 = vmatpush1.msra.mxu0 %v224
    %526 = vmatprep.subr.mxu0 %v223
    %527 = vmatpush1.msra.mxu0 %v222
    %528 = vmatprep.subr.mxu0 %v221
    %529 = vmatpush1.msra.mxu0 %v220
    %530 = vmatprep.subr.mxu0 %v219
    %531 = vmatpush1.msra.mxu0 %v218
    %532 = vmatprep.subr.mxu0 %v217
    %533 = vmatpush1.msra.mxu0 %v216
    %534 = vmatprep.subr.mxu0 %v215
    %535 = vmatpush1.msra.mxu0 %v214
    %536 = vmatprep.subr.mxu0 0.0
    %537 = vmatpush2.msra.mxu0 0.0
    %538 = vmatprep.subr.mxu0 0.0
    %539 = vmatpush2.msra.mxu0 0.0
    %540 = vmatprep.subr.mxu0 0.0
    %541 = vmatpush2.msra.mxu0 0.0
    %542 = vmatprep.subr.mxu0 0.0
    %543 = vmatpush2.msra.mxu0 0.0
    %544 = vmatprep.subr.mxu0 0.0
    %545 = vmatpush2.msra.mxu0 0.0
    %546 = vmatprep.subr.mxu0 0.0
    %547 = vmatpush2.msra.mxu0 0.0
    %548 = vmatprep.subr.mxu0 0.0
    %549 = vmatpush2.msra.mxu0 0.0
    %550 = vmatprep.subr.mxu0 0.0
    %551 = vmatpush2.msra.mxu0 0.0
    %552 = vmatprep.subr.mxu0 0.0
    %553 = vmatpush2.msra.mxu0 0.0
    %554 = vmatprep.subr.mxu0 0.0
    %555 = vmatpush2.msra.mxu0 0.0
    %556 = vmatprep.subr.mxu0 0.0
    %557 = vmatpush2.msra.mxu0 0.0
    %558 = vmatprep.subr.mxu0 0.0
    %559 = vmatpush2.msra.mxu0 0.0
    %560 = vmatprep.subr.mxu0 0.0
    %561 = vmatpush2.msra.mxu0 0.0
    %562 = vmatprep.subr.mxu0 0.0
    %563 = vmatpush2.msra.mxu0 0.0
    %564 = vmatprep.subr.mxu0 0.0
    %565 = vmatpush2.msra.mxu0 0.0
    %566 = vmatprep.subr.mxu0 0.0
    %567 = vmatpush2.msra.mxu0 0.0
    %568 = vmatprep.mubr.f32.mxu0 0.0
    %569 = vmatmul.mubr.f32.gmra.mxu0 %v499
    %v570 = vpop.f32.mrf.mxu0
    %v571 = vadd.f32 0.0, %v570
    %v572 = vpop.f32.mrf.mxu0
    %v573 = vadd.f32 0.0, %v572
    %574 = vmatprep.mubr.f32.mxu0 0.0
    %575 = vmatmul.mubr.f32.gmra.mxu0 %v502
    %v576 = vpop.f32.mrf.mxu0
    %v577 = vadd.f32 0.0, %v576
    %v578 = vpop.f32.mrf.mxu0
    %v579 = vadd.f32 0.0, %v578
    %580 = vdwg.mxu0
    %s581 = scalar_lea.vmem [#allocation3], 64
    %582 = vst [vmem:[%s581 + $0x20] sm:$0xff] %v571
    %583 = vst [vmem:[%s581 + $0x28] sm:$0xff] %v573
    %584 = vst [vmem:[%s581 + $0x30] sm:$0xff] %v577
    %585 = vst [vmem:[%s581 + $0x38] sm:$0xff] %v579
    %s586 = smul.u32 8, 2
    %s587 = smul.u32 %s586, 2
    %s588 = smul.u32 %s587, 2
    %s589 = sshll.u32 %s588, 4
    %590 = dma.done [#allocation2], %s589
    // Predicated region
    $region60: #{tpu_custom_call.1} parent=1 // pred_check
      _
    $region61: #{tpu_custom_call.1} parent=1 // pred_check_branch
      %592 = sbr.rel (0) target = $region63
    $region62: #{tpu_custom_call.1} parent=1 // pred_region
      %s594 = ssub.s32 2048, 2048
      %595 = vsyncadd [#allocation4], %s594
      %s596 = sshll.u32 [#allocation3], 4
      %s597 = int_to_ptr.vmem [resolvable:$true] %s596
      %602 = dma.vmem_to_hbm [thread:$0]  %s597, 2048, %s6, [#allocation4], 256, 256, 16
    $region63: #{tpu_custom_call.1} parent=1 // pred_fallthru
      _
    // Predicated region
    $region64: #{tpu_custom_call.1} parent=1 // pred_check
      _
    $region65: #{tpu_custom_call.1} parent=1 // pred_check_branch
      %604 = sbr.rel (0) target = $region67
    $region66: #{tpu_custom_call.1} parent=1 // pred_region
      %605 = dma.done [#allocation4], 2048
    $region67: #{tpu_custom_call.1} parent=1 // pred_fallthru
      _
    %606 = vsyncpa [#allocation4], 1
  %607 = vsyncmov [#allocation2]
  %s608 = vpop.sfrf %607
  %p609 = scmp.eq.s32.totalorder %s608, 0
  %p610 = pneg %p609
  %612 = shalt.err (%p610)

</llo_original>
